<compile_context>
chip_gen: v7x
topology: tpu7x:2x2x1
jax: 0.10.0
libtpu: 0.0.40
codegen_flags: <defaults>
</compile_context>

<pallas_src>
import functools

import jax
import jax.numpy as jnp
import numpy as np
from jax import lax
from jax.experimental import pallas as pl
from jax.experimental.pallas import tpu as pltpu

BN_EPS = 1e-5


def _block_kernel(xs_ref, waT_ref, wbT_ref, bn_ref, bb_ref, o_ref, *, center_row):
    # xs_ref : (K*K*C, N*H*W)  im2col patches, lane axis = flattened N*H*W
    # waT_ref: (4C, K*K*C)     both branches' KxK conv weights, transposed & stacked
    # wbT_ref: (C, 4C)         both branches' 1x1 conv weights, transposed & stacked
    # bn_ref : (4C, 2)         column 0 = gamma, column 1 = beta (both branches)
    # bb_ref : (C, 1)          summed 1x1 conv biases of both branches
    # o_ref  : (C, N*H*W)      lane-dense output slab
    C = o_ref.shape[0]
    xs = xs_ref[...]

    # Fused KxK "SAME" conv for both branches: a single MXU matmul (im2col form).
    # The KxK conv bias is omitted: training-mode BN subtracts the per-channel
    # batch mean, which cancels a per-channel bias exactly.
    acc = jnp.dot(waT_ref[...], xs, preferred_element_type=jnp.float32)   # (4C, NHW)

    # BatchNorm2d, training mode: per-channel (per-row) stats over the lane axis.
    mean = jnp.mean(acc, axis=1, keepdims=True)                           # (4C, 1)
    d = acc - mean
    var = jnp.mean(d * d, axis=1, keepdims=True)                          # (4C, 1)
    gamma = bn_ref[:, 0:1]
    beta = bn_ref[:, 1:2]
    h = d * (lax.rsqrt(var + BN_EPS) * gamma) + beta                      # (4C, NHW)

    # Fused 1x1 convs (both branches) + residual from the center tap of the patches.
    y = jnp.dot(wbT_ref[...], h, preferred_element_type=jnp.float32) + bb_ref[...]
    o_ref[...] = (xs[center_row:center_row + C, :] + y).astype(o_ref.dtype)


def block_forward(x, params):
    """x: (N, C, H, W) float32 (PyTorch NCHW layout)."""
    N, C, H, W = x.shape
    K = params["w1a"].shape[0]
    Cm = params["w1a"].shape[3]
    p = K // 2
    NHW = N * H * W

    # im2col: (K*K*C, N*H*W), lane axis = flattened N*H*W. Pure layout work in XLA.
    xpad = jnp.pad(x, ((0, 0), (0, 0), (p, p), (p, p)))
    taps = [xpad[:, :, dy:dy + H, dx:dx + W]
            for dy in range(K) for dx in range(K)]            # each (N, C, H, W)
    xs = jnp.stack(taps, axis=0).transpose(0, 2, 1, 3, 4).reshape(K * K * C, NHW)

    # Pack both branches' parameters (fused along the 2C channel axis).
    waT = jnp.concatenate([params["w1a"].reshape(K * K * C, Cm).T,
                           params["w2a"].reshape(K * K * C, Cm).T], axis=0)  # (4C, KKC)
    wbT = jnp.concatenate([params["w1b"].T, params["w2b"].T], axis=1)        # (C, 4C)
    gamma = jnp.concatenate([params["g1"].reshape(-1), params["g2"].reshape(-1)])
    beta = jnp.concatenate([params["be1"].reshape(-1), params["be2"].reshape(-1)])
    bn = jnp.stack([gamma, beta], axis=1)                                    # (4C, 2)
    bb = (params["b1b"] + params["b2b"]).reshape(C, 1)                       # (C, 1)

    center_row = (p * K + p) * C
    kernel = functools.partial(_block_kernel, center_row=center_row)

    vmem = pl.BlockSpec(memory_space=pltpu.MemorySpace.VMEM)
    # TODO(synk): for large N*H*W, add a grid over the lane axis with a two-pass BN
    # (pass 1: conv + per-channel sum/sumsq; pass 2: normalize + 1x1) instead of
    # whole-array VMEM residency; that also lets v7x shard tiles across its 2 cores.
    out_t = pl.pallas_call(
        kernel,
        out_shape=jax.ShapeDtypeStruct((C, NHW), x.dtype),
        in_specs=[vmem] * 5,
        out_specs=vmem,
    )(xs, waT, wbT, bn, bb)

    return out_t.reshape(C, N, H, W).transpose(1, 0, 2, 3)


def make_params(key, C, K):
    """Deterministic synthetic init matching Block.init_weights (kaiming fan_out)."""
    Cm = 2 * C
    ks = jax.random.split(key, 4)
    std_kk = np.sqrt(2.0 / (Cm * K * K))   # KxK conv: fan_out = out_ch * K * K
    std_11 = np.sqrt(2.0 / C)              # 1x1 conv: fan_out = out_ch
    return {
        "w1a": jax.random.normal(ks[0], (K, K, C, Cm), jnp.float32) * std_kk,
        "b1a": jnp.zeros((Cm,), jnp.float32),
        "g1": jnp.ones((Cm,), jnp.float32),    # BN weight = 1
        "be1": jnp.zeros((Cm,), jnp.float32),  # BN bias = 0
        "w1b": jax.random.normal(ks[1], (Cm, C), jnp.float32) * std_11,
        "b1b": jnp.zeros((C,), jnp.float32),
        "w2a": jax.random.normal(ks[2], (K, K, C, Cm), jnp.float32) * std_kk,
        "b2a": jnp.zeros((Cm,), jnp.float32),
        "g2": jnp.ones((Cm,), jnp.float32),
        "be2": jnp.zeros((Cm,), jnp.float32),
        "w2b": jax.random.normal(ks[3], (Cm, C), jnp.float32) * std_11,
        "b2b": jnp.zeros((C,), jnp.float32),
    }


def ref_forward(x, params):
    """Pure-JAX reference (same math as the PyTorch module in training mode), NCHW."""
    def branch(wa, ba, g, be, wb, bb):
        h = lax.conv_general_dilated(
            x, wa, window_strides=(1, 1), padding="SAME",
            dimension_numbers=("NCHW", "HWIO", "NCHW")) + ba.reshape(1, -1, 1, 1)
        mean = jnp.mean(h, axis=(0, 2, 3), keepdims=True)
        var = jnp.mean((h - mean) ** 2, axis=(0, 2, 3), keepdims=True)
        h = (h - mean) * lax.rsqrt(var + BN_EPS) * g.reshape(1, -1, 1, 1) \
            + be.reshape(1, -1, 1, 1)
        return jnp.einsum("nchw,cd->ndhw", h, wb) + bb.reshape(1, -1, 1, 1)

    return (x
            + branch(params["w1a"], params["b1a"], params["g1"], params["be1"],
                     params["w1b"], params["b1b"])
            + branch(params["w2a"], params["b2a"], params["g2"], params["be2"],
                     params["w2b"], params["b2b"]))


if __name__ == "__main__":
    N, C, H, W = 2, 4, 16, 16      # num_residual_units = 4
    K = 3                          # kernel_size = 3

    key = jax.random.PRNGKey(0)
    kx, kp = jax.random.split(key)
    x = jax.random.normal(kx, (N, C, H, W), jnp.float32)   # NCHW (PyTorch layout)
    params = make_params(kp, C, K)

    fwd = jax.jit(block_forward)
    out = jax.block_until_ready(fwd(x, params))
    ref = jax.block_until_ready(ref_forward(x, params))
    np.testing.assert_allclose(np.asarray(out), np.asarray(ref),
                               rtol=1e-4, atol=1e-4)
    print("KERNEL_OK")
</pallas_src>

<mosaic_0001>
module attributes {stable_mosaic.version = 11 : i64} {
  func.func @_block_kernel(%arg0: memref<36x512xf32, #tpu.memory_space<vmem>>, %arg1: memref<16x36xf32, #tpu.memory_space<vmem>>, %arg2: memref<4x16xf32, #tpu.memory_space<vmem>>, %arg3: memref<16x2xf32, #tpu.memory_space<vmem>>, %arg4: memref<4x1xf32, #tpu.memory_space<vmem>>, %arg5: memref<4x512xf32, #tpu.memory_space<vmem>>) attributes {dimension_semantics = [], scalar_prefetch = 0 : i64, scratch_operands = 0 : i64, tpu.core_type = #tpu.core_type<tc>} {
    %c0 = arith.constant 0 : index
    %c0_0 = arith.constant 0 : index
    %0 = vector.load %arg0[%c0, %c0_0] : memref<36x512xf32, #tpu.memory_space<vmem>>, vector<36x512xf32>
    %c0_1 = arith.constant 0 : index
    %c0_2 = arith.constant 0 : index
    %1 = vector.load %arg1[%c0_1, %c0_2] : memref<16x36xf32, #tpu.memory_space<vmem>>, vector<16x36xf32>
    %cst = arith.constant dense<0.000000e+00> : vector<16x512xf32>
    %2 = tpu.matmul %1, %0, %cst {dimension_numbers = #tpu.dot_dimension_numbers<[1], [0], [0], [1], [0, 0, 1, 1], [], []>} : vector<16x36xf32>, vector<36x512xf32>, vector<16x512xf32> -> vector<16x512xf32>
    %cst_3 = arith.constant dense<0.000000e+00> : vector<16xf32>
    %3 = vector.multi_reduction <add>, %2, %cst_3 [1] : vector<16x512xf32> to vector<16xf32>
    %4 = vector.shape_cast %3 : vector<16xf32> to vector<16x1xf32>
    %cst_4 = arith.constant 5.120000e+02 : f32
    %5 = vector.broadcast %cst_4 : f32 to vector<16x1xf32>
    %6 = arith.divf %4, %5 : vector<16x1xf32>
    %7 = vector.broadcast %6 : vector<16x1xf32> to vector<16x512xf32>
    %8 = arith.subf %2, %7 : vector<16x512xf32>
    %9 = arith.mulf %8, %8 : vector<16x512xf32>
    %cst_5 = arith.constant dense<0.000000e+00> : vector<16xf32>
    %10 = vector.multi_reduction <add>, %9, %cst_5 [1] : vector<16x512xf32> to vector<16xf32>
    %11 = vector.shape_cast %10 : vector<16xf32> to vector<16x1xf32>
    %cst_6 = arith.constant 5.120000e+02 : f32
    %12 = vector.broadcast %cst_6 : f32 to vector<16x1xf32>
    %13 = arith.divf %11, %12 : vector<16x1xf32>
    %c0_7 = arith.constant 0 : index
    %c0_8 = arith.constant 0 : index
    %14 = vector.load %arg3[%c0_7, %c0_8] : memref<16x2xf32, #tpu.memory_space<vmem>>, vector<16x1xf32>
    %c0_9 = arith.constant 0 : index
    %c1 = arith.constant 1 : index
    %15 = vector.load %arg3[%c0_9, %c1] : memref<16x2xf32, #tpu.memory_space<vmem>>, vector<16x1xf32>
    %cst_10 = arith.constant 9.99999974E-6 : f32
    %16 = vector.broadcast %cst_10 : f32 to vector<16x1xf32>
    %17 = arith.addf %13, %16 : vector<16x1xf32>
    %18 = math.rsqrt %17 : vector<16x1xf32>
    %19 = arith.mulf %18, %14 : vector<16x1xf32>
    %20 = vector.broadcast %19 : vector<16x1xf32> to vector<16x512xf32>
    %21 = arith.mulf %8, %20 : vector<16x512xf32>
    %22 = vector.broadcast %15 : vector<16x1xf32> to vector<16x512xf32>
    %23 = arith.addf %21, %22 : vector<16x512xf32>
    %c0_11 = arith.constant 0 : index
    %c0_12 = arith.constant 0 : index
    %24 = vector.load %arg2[%c0_11, %c0_12] : memref<4x16xf32, #tpu.memory_space<vmem>>, vector<4x16xf32>
    %cst_13 = arith.constant dense<0.000000e+00> : vector<4x512xf32>
    %25 = tpu.matmul %24, %23, %cst_13 {dimension_numbers = #tpu.dot_dimension_numbers<[1], [0], [0], [1], [0, 0, 1, 1], [], []>} : vector<4x16xf32>, vector<16x512xf32>, vector<4x512xf32> -> vector<4x512xf32>
    %c0_14 = arith.constant 0 : index
    %c0_15 = arith.constant 0 : index
    %26 = vector.load %arg4[%c0_14, %c0_15] : memref<4x1xf32, #tpu.memory_space<vmem>>, vector<4x1xf32>
    %27 = vector.broadcast %26 : vector<4x1xf32> to vector<4x512xf32>
    %28 = arith.addf %25, %27 : vector<4x512xf32>
    %29 = vector.extract_strided_slice %0 {offsets = [16, 0], sizes = [4, 512], strides = [1, 1]} : vector<36x512xf32> to vector<4x512xf32>
    %30 = arith.addf %29, %28 : vector<4x512xf32>
    %c0_16 = arith.constant 0 : index
    %c0_17 = arith.constant 0 : index
    %31 = vector.load %arg5[%c0_16, %c0_17] : memref<4x512xf32, #tpu.memory_space<vmem>>, vector<4x512xf32>
    tpu.vector_store %arg5[%c0_16, %c0_17], %30 {strides = array<i32>} : memref<4x512xf32, #tpu.memory_space<vmem>>, vector<4x512xf32>,
    return
  }
}

</mosaic_0001>

<llo_original>
// kernel: block_forward.1
$region0: #{block_forward.1}
  #allocation0 [shape = 'u32[]', space=smem, size = 0x4, offset = 0x4, fixed_abs, tag = 'smem constant byte address 0x4 - core index']
  #allocation1 [shape = 'u32[144,128]{1,0:T(1,128)}', space=vmem, size = 0x12000, scoped, tag = 'internal scratch']
  %s0 = inlined_call_operand.vmem [shape: f32[36,512], index: 0, kind: input, shape index: {}]
  %s1 = inlined_call_operand.vmem [shape: f32[16,36], index: 1, kind: input, shape index: {}]
  %s2 = inlined_call_operand.vmem [shape: f32[4,16], index: 2, kind: input, shape index: {}]
  %s3 = inlined_call_operand.vmem [shape: f32[16,2], index: 3, kind: input, shape index: {}]
  %s4 = inlined_call_operand.vmem [shape: f32[4,1], index: 4, kind: input, shape index: {}]
  %s5 = inlined_call_operand.vmem [shape: f32[4,512], index: 5, kind: output, shape index: {}]
  %s6 = sld [smem:[#allocation0]]
  $region30: #{block_forward.1} parent=0
    _
  %s8 = ssub.s32 1, %s6
  %s9 = scalar_select 0, %s8, %s6
  // Predicated region
  $region2: #{block_forward.1} parent=0 // pred_check
    _
  $region3: #{block_forward.1} parent=0 // pred_check_branch
    %11 = sbr.rel (0) target = $region5
  $region4: #{block_forward.1} parent=0 // pred_region
    _
  $region5: #{block_forward.1} parent=0 // pred_fallthru
    _
  // Predicated region
  $region6: #{block_forward.1} parent=0 // pred_check
    _
  $region7: #{block_forward.1} parent=0 // pred_check_branch
    %13 = sbr.rel (0) target = $region9
  $region8: #{block_forward.1} parent=0 // pred_region
    _
  $region9: #{block_forward.1} parent=0 // pred_fallthru
    _
  // Predicated region
  $region10: #{block_forward.1} parent=0 // pred_check
    _
  $region11: #{block_forward.1} parent=0 // pred_check_branch
    %15 = sbr.rel (0) target = $region13
  $region12: #{block_forward.1} parent=0 // pred_region
    _
  $region13: #{block_forward.1} parent=0 // pred_fallthru
    _
  // Predicated region
  $region14: #{block_forward.1} parent=0 // pred_check
    _
  $region15: #{block_forward.1} parent=0 // pred_check_branch
    %17 = sbr.rel (0) target = $region17
  $region16: #{block_forward.1} parent=0 // pred_region
    _
  $region17: #{block_forward.1} parent=0 // pred_fallthru
    _
  // Predicated region
  $region18: #{block_forward.1} parent=0 // pred_check
    _
  $region19: #{block_forward.1} parent=0 // pred_check_branch
    %19 = sbr.rel (0) target = $region21
  $region20: #{block_forward.1} parent=0 // pred_region
    _
  $region21: #{block_forward.1} parent=0 // pred_fallthru
    _
  %v20 = vld [vmem:[%s0] sm:$0xff]
  %v21 = vld [vmem:[%s0 + $0x8] sm:$0xff]
  %v22 = vld [vmem:[%s0 + $0x10] sm:$0xff]
  %v23 = vld [vmem:[%s0 + $0x18] sm:$0xff]
  %v24 = vld [vmem:[%s0 + $0x20] sm:$0xff]
  %v25 = vld [vmem:[%s0 + $0x28] sm:$0xff]
  %v26 = vld [vmem:[%s0 + $0x30] sm:$0xff]
  %v27 = vld [vmem:[%s0 + $0x38] sm:$0xff]
  %v28 = vld [vmem:[%s0 + $0x40] sm:$0xff]
  %v29 = vld [vmem:[%s0 + $0x48] sm:$0xff]
  %v30 = vld [vmem:[%s0 + $0x50] sm:$0xff]
  %v31 = vld [vmem:[%s0 + $0x58] sm:$0xff]
  %v32 = vld [vmem:[%s0 + $0x60] sm:$0xff]
  %v33 = vld [vmem:[%s0 + $0x68] sm:$0xff]
  %v34 = vld [vmem:[%s0 + $0x70] sm:$0xff]
  %v35 = vld [vmem:[%s0 + $0x78] sm:$0xff]
  %v36 = vld [vmem:[%s0 + $0x80] sm:$0xf]
  %v37 = vld [vmem:[%s0 + $0x88] sm:$0xf]
  %v38 = vld [vmem:[%s0 + $0x90] sm:$0xf]
  %v39 = vld [vmem:[%s0 + $0x98] sm:$0xf]
  %v40 = vld [vmem:[%s1] sm:$0xff]
  %v41 = vld [vmem:[%s1 + $0x8] sm:$0xff]
  %vm42 = vcmask 293888
  %v44 = vsel %vm42, %v40, 0
  %v47 = vsel %vm42, %v41, 0
  %vm49 = vcmask 1043456
  %v51 = vsel %vm49, %v36, 0
  %v54 = vsel %vm49, %v37, 0
  %v57 = vsel %vm49, %v38, 0
  %v60 = vsel %vm49, %v39, 0
  %62 = vmatprep.subr.mxu0 %v21
  %63 = vmatpush1.msra.mxu0 %v20
  %64 = vmatprep.subr.mxu0 %v25
  %65 = vmatpush1.msra.mxu0 %v24
  %66 = vmatprep.subr.mxu0 %v29
  %67 = vmatpush1.msra.mxu0 %v28
  %68 = vmatprep.subr.mxu0 %v33
  %69 = vmatpush1.msra.mxu0 %v32
  %70 = vmatprep.subr.mxu0 %v54
  %71 = vmatpush1.msra.mxu0 %v51
  %72 = vmatprep.subr.mxu0 0.0
  %73 = vmatpush1.msra.mxu0 0.0
  %74 = vmatprep.subr.mxu0 0.0
  %75 = vmatpush1.msra.mxu0 0.0
  %76 = vmatprep.subr.mxu0 0.0
  %77 = vmatpush1.msra.mxu0 0.0
  %78 = vmatprep.subr.mxu0 0.0
  %79 = vmatpush1.msra.mxu0 0.0
  %80 = vmatprep.subr.mxu0 0.0
  %81 = vmatpush1.msra.mxu0 0.0
  %82 = vmatprep.subr.mxu0 0.0
  %83 = vmatpush1.msra.mxu0 0.0
  %84 = vmatprep.subr.mxu0 0.0
  %85 = vmatpush1.msra.mxu0 0.0
  %86 = vmatprep.subr.mxu0 0.0
  %87 = vmatpush1.msra.mxu0 0.0
  %88 = vmatprep.subr.mxu0 0.0
  %89 = vmatpush1.msra.mxu0 0.0
  %90 = vmatprep.subr.mxu0 0.0
  %91 = vmatpush1.msra.mxu0 0.0
  %92 = vmatprep.subr.mxu0 0.0
  %93 = vmatpush1.msra.mxu0 0.0
  %94 = vmatprep.subr.mxu0 0.0
  %95 = vmatpush1.msra.mxu0 0.0
  %96 = vmatprep.subr.mxu0 0.0
  %97 = vmatpush1.msra.mxu0 0.0
  %98 = vmatprep.subr.mxu0 0.0
  %99 = vmatpush1.msra.mxu0 0.0
  %100 = vmatprep.subr.mxu0 0.0
  %101 = vmatpush1.msra.mxu0 0.0
  %102 = vmatprep.subr.mxu0 0.0
  %103 = vmatpush1.msra.mxu0 0.0
  %104 = vmatprep.subr.mxu0 0.0
  %105 = vmatpush1.msra.mxu0 0.0
  %106 = vmatprep.subr.mxu0 0.0
  %107 = vmatpush1.msra.mxu0 0.0
  %108 = vmatprep.subr.mxu0 0.0
  %109 = vmatpush1.msra.mxu0 0.0
  %110 = vmatprep.subr.mxu0 0.0
  %111 = vmatpush1.msra.mxu0 0.0
  %112 = vmatprep.subr.mxu0 0.0
  %113 = vmatpush1.msra.mxu0 0.0
  %114 = vmatprep.subr.mxu0 0.0
  %115 = vmatpush1.msra.mxu0 0.0
  %116 = vmatprep.subr.mxu0 0.0
  %117 = vmatpush1.msra.mxu0 0.0
  %118 = vmatprep.subr.mxu0 0.0
  %119 = vmatpush1.msra.mxu0 0.0
  %120 = vmatprep.subr.mxu0 0.0
  %121 = vmatpush1.msra.mxu0 0.0
  %122 = vmatprep.subr.mxu0 0.0
  %123 = vmatpush1.msra.mxu0 0.0
  %124 = vmatprep.subr.mxu0 0.0
  %125 = vmatpush1.msra.mxu0 0.0
  %126 = vmatprep.mubr.f32.mxu0 0.0
  %127 = vmatmul.mubr.f32.gmra.mrb[0].mxu0 %v44
  %v128 = vpop.f32.mrb[0].mxu0
  %v129 = vadd.f32 0.0, %v128
  %v130 = vpop.f32.mrb[0].mxu0
  %v131 = vadd.f32 0.0, %v130
  %132 = vmatprep.mubr.f32.mxu0 0.0
  %133 = vmatmul.mubr.f32.gmra.mrb[0].mxu0 %v47
  %v134 = vpop.f32.mrb[0].mxu0
  %v135 = vadd.f32 0.0, %v134
  %v136 = vpop.f32.mrb[0].mxu0
  %v137 = vadd.f32 0.0, %v136
  %138 = vdwg.mxu0
  %139 = vmatprep.subr.mxu0 %v23
  %140 = vmatpush1.msra.mxu0 %v22
  %141 = vmatprep.subr.mxu0 %v27
  %142 = vmatpush1.msra.mxu0 %v26
  %143 = vmatprep.subr.mxu0 %v31
  %144 = vmatpush1.msra.mxu0 %v30
  %145 = vmatprep.subr.mxu0 %v35
  %146 = vmatpush1.msra.mxu0 %v34
  %147 = vmatprep.subr.mxu0 %v60
  %148 = vmatpush1.msra.mxu0 %v57
  %149 = vmatprep.subr.mxu0 0.0
  %150 = vmatpush1.msra.mxu0 0.0
  %151 = vmatprep.subr.mxu0 0.0
  %152 = vmatpush1.msra.mxu0 0.0
  %153 = vmatprep.subr.mxu0 0.0
  %154 = vmatpush1.msra.mxu0 0.0
  %155 = vmatprep.subr.mxu0 0.0
  %156 = vmatpush1.msra.mxu0 0.0
  %157 = vmatprep.subr.mxu0 0.0
  %158 = vmatpush1.msra.mxu0 0.0
  %159 = vmatprep.subr.mxu0 0.0
  %160 = vmatpush1.msra.mxu0 0.0
  %161 = vmatprep.subr.mxu0 0.0
  %162 = vmatpush1.msra.mxu0 0.0
  %163 = vmatprep.subr.mxu0 0.0
  %164 = vmatpush1.msra.mxu0 0.0
  %165 = vmatprep.subr.mxu0 0.0
  %166 = vmatpush1.msra.mxu0 0.0
  %167 = vmatprep.subr.mxu0 0.0
  %168 = vmatpush1.msra.mxu0 0.0
  %169 = vmatprep.subr.mxu0 0.0
  %170 = vmatpush1.msra.mxu0 0.0
  %171 = vmatprep.subr.mxu0 0.0
  %172 = vmatpush1.msra.mxu0 0.0
  %173 = vmatprep.subr.mxu0 0.0
  %174 = vmatpush1.msra.mxu0 0.0
  %175 = vmatprep.subr.mxu0 0.0
  %176 = vmatpush1.msra.mxu0 0.0
  %177 = vmatprep.subr.mxu0 0.0
  %178 = vmatpush1.msra.mxu0 0.0
  %179 = vmatprep.subr.mxu0 0.0
  %180 = vmatpush1.msra.mxu0 0.0
  %181 = vmatprep.subr.mxu0 0.0
  %182 = vmatpush1.msra.mxu0 0.0
  %183 = vmatprep.subr.mxu0 0.0
  %184 = vmatpush1.msra.mxu0 0.0
  %185 = vmatprep.subr.mxu0 0.0
  %186 = vmatpush1.msra.mxu0 0.0
  %187 = vmatprep.subr.mxu0 0.0
  %188 = vmatpush1.msra.mxu0 0.0
  %189 = vmatprep.subr.mxu0 0.0
  %190 = vmatpush1.msra.mxu0 0.0
  %191 = vmatprep.subr.mxu0 0.0
  %192 = vmatpush1.msra.mxu0 0.0
  %193 = vmatprep.subr.mxu0 0.0
  %194 = vmatpush1.msra.mxu0 0.0
  %195 = vmatprep.subr.mxu0 0.0
  %196 = vmatpush1.msra.mxu0 0.0
  %197 = vmatprep.subr.mxu0 0.0
  %198 = vmatpush1.msra.mxu0 0.0
  %199 = vmatprep.subr.mxu0 0.0
  %200 = vmatpush1.msra.mxu0 0.0
  %201 = vmatprep.subr.mxu0 0.0
  %202 = vmatpush1.msra.mxu0 0.0
  %203 = vmatprep.mubr.f32.mxu0 0.0
  %204 = vmatmul.mubr.f32.gmra.mrb[0].mxu0 %v44
  %v205 = vpop.f32.mrb[0].mxu0
  %v206 = vadd.f32 0.0, %v205
  %v207 = vpop.f32.mrb[0].mxu0
  %v208 = vadd.f32 0.0, %v207
  %209 = vmatprep.mubr.f32.mxu0 0.0
  %210 = vmatmul.mubr.f32.gmra.mrb[0].mxu0 %v47
  %v211 = vpop.f32.mrb[0].mxu0
  %v212 = vadd.f32 0.0, %v211
  %v213 = vpop.f32.mrb[0].mxu0
  %v214 = vadd.f32 0.0, %v213
  %215 = vdwg.mxu0
  %v216 = vadd.f32 %v129, %v131
  %v217 = vadd.f32 %v216, %v206
  %v218 = vadd.f32 %v217, %v208
  %219 = vadd.xlane.f32.xlu0 %v218
  %v220 = vpop.xlane.xlu0 %219
  %v221 = vadd.f32 %v135, %v137
  %v222 = vadd.f32 %v221, %v212
  %v223 = vadd.f32 %v222, %v214
  %224 = vadd.xlane.f32.xlu0 %v223
  %v225 = vpop.xlane.xlu0 %224
  %v226 = vrcp.pop 512.0
  %v227 = vmul.f32 %v220, %v226
  %v228 = vmul.f32 %v225, %v226
  %v229 = vsub.f32 %v129, %v227
  %v230 = vsub.f32 %v131, %v227
  %v231 = vsub.f32 %v206, %v227
  %v232 = vsub.f32 %v208, %v227
  %v233 = vsub.f32 %v135, %v228
  %v234 = vsub.f32 %v137, %v228
  %v235 = vsub.f32 %v212, %v228
  %v236 = vsub.f32 %v214, %v228
  %v237 = vmul.f32 %v229, %v229
  %v238 = vmul.f32 %v230, %v230
  %v239 = vmul.f32 %v231, %v231
  %v240 = vmul.f32 %v232, %v232
  %v241 = vmul.f32 %v233, %v233
  %v242 = vmul.f32 %v234, %v234
  %v243 = vmul.f32 %v235, %v235
  %v244 = vmul.f32 %v236, %v236
  %v245 = vadd.f32 %v237, %v238
  %v246 = vadd.f32 %v245, %v239
  %v247 = vadd.f32 %v246, %v240
  %248 = vadd.xlane.f32.xlu0 %v247
  %v249 = vpop.xlane.xlu0 %248
  %v250 = vadd.f32 %v241, %v242
  %v251 = vadd.f32 %v250, %v243
  %v252 = vadd.f32 %v251, %v244
  %253 = vadd.xlane.f32.xlu0 %v252
  %v254 = vpop.xlane.xlu0 %253
  %v255 = vmul.f32 %v249, %v226
  %v256 = vmul.f32 %v254, %v226
  %v257 = vld [vmem:[%s3] sm:$0xff]
  %v258 = vld [vmem:[%s3 + $0x8] sm:$0xff]
  %v259 = vadd.f32 %v255, 1e-05
  %v260 = vadd.f32 %v256, 1e-05
  %v261 = vrsqrt.pop %v259
  %v262 = vrsqrt.pop %v260
  %v263 = vmul.f32 %v261, %v257
  %v264 = vmul.f32 %v262, %v258
  %266 = vset.pattern.permute.xlu0 0
  %267 = vperm.xlu0 %266, %v263
  %v268 = vpop.permute.xlu0 %267
  %271 = vset.pattern.permute.xlu0 0
  %272 = vperm.xlu0 %271, %v264
  %v273 = vpop.permute.xlu0 %272
  %v275 = vmul.f32 %v229, %v268
  %v276 = vmul.f32 %v230, %v268
  %v277 = vmul.f32 %v231, %v268
  %v278 = vmul.f32 %v232, %v268
  %v279 = vmul.f32 %v233, %v273
  %v280 = vmul.f32 %v234, %v273
  %v281 = vmul.f32 %v235, %v273
  %v282 = vmul.f32 %v236, %v273
  %284 = vset.pattern.permute.xlu0 1
  %285 = vperm.xlu0 %284, %v257
  %v286 = vpop.permute.xlu0 %285
  %289 = vset.pattern.permute.xlu0 1
  %290 = vperm.xlu0 %289, %v258
  %v291 = vpop.permute.xlu0 %290
  %v293 = vadd.f32 %v275, %v286
  %v294 = vadd.f32 %v276, %v286
  %v295 = vadd.f32 %v277, %v286
  %v296 = vadd.f32 %v278, %v286
  %v297 = vadd.f32 %v279, %v291
  %v298 = vadd.f32 %v280, %v291
  %v299 = vadd.f32 %v281, %v291
  %v300 = vadd.f32 %v282, %v291
  %v301 = vld [vmem:[%s2] sm:$0xf]
  %v302 = vld [vmem:[%s4] sm:$0xf]
  %304 = vset.pattern.permute.xlu0 0
  %305 = vperm.xlu0 %304, %v302
  %v306 = vpop.permute.xlu0 %305
  %vm308 = vcmask 130048
  %v310 = vsel %vm308, %v301, 0
  %312 = vmatprep.subr.mxu0 %v294
  %313 = vmatpush1.msra.mxu0 %v293
  %314 = vmatprep.subr.mxu0 %v298
  %315 = vmatpush1.msra.mxu0 %v297
  %316 = vmatprep.subr.mxu0 0.0
  %317 = vmatpush1.msra.mxu0 0.0
  %318 = vmatprep.subr.mxu0 0.0
  %319 = vmatpush1.msra.mxu0 0.0
  %320 = vmatprep.subr.mxu0 0.0
  %321 = vmatpush1.msra.mxu0 0.0
  %322 = vmatprep.subr.mxu0 0.0
  %323 = vmatpush1.msra.mxu0 0.0
  %324 = vmatprep.subr.mxu0 0.0
  %325 = vmatpush1.msra.mxu0 0.0
  %326 = vmatprep.subr.mxu0 0.0
  %327 = vmatpush1.msra.mxu0 0.0
  %328 = vmatprep.subr.mxu0 0.0
  %329 = vmatpush1.msra.mxu0 0.0
  %330 = vmatprep.subr.mxu0 0.0
  %331 = vmatpush1.msra.mxu0 0.0
  %332 = vmatprep.subr.mxu0 0.0
  %333 = vmatpush1.msra.mxu0 0.0
  %334 = vmatprep.subr.mxu0 0.0
  %335 = vmatpush1.msra.mxu0 0.0
  %336 = vmatprep.subr.mxu0 0.0
  %337 = vmatpush1.msra.mxu0 0.0
  %338 = vmatprep.subr.mxu0 0.0
  %339 = vmatpush1.msra.mxu0 0.0
  %340 = vmatprep.subr.mxu0 0.0
  %341 = vmatpush1.msra.mxu0 0.0
  %342 = vmatprep.subr.mxu0 0.0
  %343 = vmatpush1.msra.mxu0 0.0
  %344 = vmatprep.subr.mxu0 0.0
  %345 = vmatpush1.msra.mxu0 0.0
  %346 = vmatprep.subr.mxu0 0.0
  %347 = vmatpush1.msra.mxu0 0.0
  %348 = vmatprep.subr.mxu0 0.0
  %349 = vmatpush1.msra.mxu0 0.0
  %350 = vmatprep.subr.mxu0 0.0
  %351 = vmatpush1.msra.mxu0 0.0
  %352 = vmatprep.subr.mxu0 0.0
  %353 = vmatpush1.msra.mxu0 0.0
  %354 = vmatprep.subr.mxu0 0.0
  %355 = vmatpush1.msra.mxu0 0.0
  %356 = vmatprep.subr.mxu0 0.0
  %357 = vmatpush1.msra.mxu0 0.0
  %358 = vmatprep.subr.mxu0 0.0
  %359 = vmatpush1.msra.mxu0 0.0
  %360 = vmatprep.subr.mxu0 0.0
  %361 = vmatpush1.msra.mxu0 0.0
  %362 = vmatprep.subr.mxu0 0.0
  %363 = vmatpush1.msra.mxu0 0.0
  %364 = vmatprep.subr.mxu0 0.0
  %365 = vmatpush1.msra.mxu0 0.0
  %366 = vmatprep.subr.mxu0 0.0
  %367 = vmatpush1.msra.mxu0 0.0
  %368 = vmatprep.subr.mxu0 0.0
  %369 = vmatpush1.msra.mxu0 0.0
  %370 = vmatprep.subr.mxu0 0.0
  %371 = vmatpush1.msra.mxu0 0.0
  %372 = vmatprep.subr.mxu0 0.0
  %373 = vmatpush1.msra.mxu0 0.0
  %374 = vmatprep.subr.mxu0 0.0
  %375 = vmatpush1.msra.mxu0 0.0
  %376 = vmatprep.mubr.f32.mxu0 0.0
  %377 = vmatmul.mubr.f32.gmra.mrb[0].mxu0 %v310
  %v378 = vpop.f32.mrb[0].mxu0
  %v379 = vadd.f32 %v306, %v378
  %v380 = vpop.f32.mrb[0].mxu0
  %v381 = vadd.f32 %v306, %v380
  %382 = vdwg.mxu0
  %383 = vmatprep.subr.mxu0 %v296
  %384 = vmatpush1.msra.mxu0 %v295
  %385 = vmatprep.subr.mxu0 %v300
  %386 = vmatpush1.msra.mxu0 %v299
  %387 = vmatprep.subr.mxu0 0.0
  %388 = vmatpush1.msra.mxu0 0.0
  %389 = vmatprep.subr.mxu0 0.0
  %390 = vmatpush1.msra.mxu0 0.0
  %391 = vmatprep.subr.mxu0 0.0
  %392 = vmatpush1.msra.mxu0 0.0
  %393 = vmatprep.subr.mxu0 0.0
  %394 = vmatpush1.msra.mxu0 0.0
  %395 = vmatprep.subr.mxu0 0.0
  %396 = vmatpush1.msra.mxu0 0.0
  %397 = vmatprep.subr.mxu0 0.0
  %398 = vmatpush1.msra.mxu0 0.0
  %399 = vmatprep.subr.mxu0 0.0
  %400 = vmatpush1.msra.mxu0 0.0
  %401 = vmatprep.subr.mxu0 0.0
  %402 = vmatpush1.msra.mxu0 0.0
  %403 = vmatprep.subr.mxu0 0.0
  %404 = vmatpush1.msra.mxu0 0.0
  %405 = vmatprep.subr.mxu0 0.0
  %406 = vmatpush1.msra.mxu0 0.0
  %407 = vmatprep.subr.mxu0 0.0
  %408 = vmatpush1.msra.mxu0 0.0
  %409 = vmatprep.subr.mxu0 0.0
  %410 = vmatpush1.msra.mxu0 0.0
  %411 = vmatprep.subr.mxu0 0.0
  %412 = vmatpush1.msra.mxu0 0.0
  %413 = vmatprep.subr.mxu0 0.0
  %414 = vmatpush1.msra.mxu0 0.0
  %415 = vmatprep.subr.mxu0 0.0
  %416 = vmatpush1.msra.mxu0 0.0
  %417 = vmatprep.subr.mxu0 0.0
  %418 = vmatpush1.msra.mxu0 0.0
  %419 = vmatprep.subr.mxu0 0.0
  %420 = vmatpush1.msra.mxu0 0.0
  %421 = vmatprep.subr.mxu0 0.0
  %422 = vmatpush1.msra.mxu0 0.0
  %423 = vmatprep.subr.mxu0 0.0
  %424 = vmatpush1.msra.mxu0 0.0
  %425 = vmatprep.subr.mxu0 0.0
  %426 = vmatpush1.msra.mxu0 0.0
  %427 = vmatprep.subr.mxu0 0.0
  %428 = vmatpush1.msra.mxu0 0.0
  %429 = vmatprep.subr.mxu0 0.0
  %430 = vmatpush1.msra.mxu0 0.0
  %431 = vmatprep.subr.mxu0 0.0
  %432 = vmatpush1.msra.mxu0 0.0
  %433 = vmatprep.subr.mxu0 0.0
  %434 = vmatpush1.msra.mxu0 0.0
  %435 = vmatprep.subr.mxu0 0.0
  %436 = vmatpush1.msra.mxu0 0.0
  %437 = vmatprep.subr.mxu0 0.0
  %438 = vmatpush1.msra.mxu0 0.0
  %439 = vmatprep.subr.mxu0 0.0
  %440 = vmatpush1.msra.mxu0 0.0
  %441 = vmatprep.subr.mxu0 0.0
  %442 = vmatpush1.msra.mxu0 0.0
  %443 = vmatprep.subr.mxu0 0.0
  %444 = vmatpush1.msra.mxu0 0.0
  %445 = vmatprep.subr.mxu0 0.0
  %446 = vmatpush1.msra.mxu0 0.0
  %447 = vmatprep.mubr.f32.mxu0 0.0
  %448 = vmatmul.mubr.f32.gmra.mrb[0].mxu0 %v310
  %v449 = vpop.f32.mrb[0].mxu0
  %v450 = vadd.f32 %v306, %v449
  %v451 = vpop.f32.mrb[0].mxu0
  %v452 = vadd.f32 %v306, %v451
  %453 = vdwg.mxu0
  %v454 = vadd.f32 %v28, %v379
  %v455 = vadd.f32 %v29, %v381
  %v456 = vadd.f32 %v30, %v450
  %v457 = vadd.f32 %v31, %v452
  %v462 = vcombine.low %v454, %v455
  %v463 = vcombine.low %v456, %v457
  %466 = vst [vmem:[%s5] sm:$0xff] %v462
  %467 = vst [vmem:[%s5 + $0x8] sm:$0xff] %v463
  // Predicated region
  $region22: #{block_forward.1} parent=0 // pred_check
    _
  $region23: #{block_forward.1} parent=0 // pred_check_branch
    %469 = sbr.rel (0) target = $region25
  $region24: #{block_forward.1} parent=0 // pred_region
    _
  $region25: #{block_forward.1} parent=0 // pred_fallthru
    _
  // Predicated region
  $region26: #{block_forward.1} parent=0 // pred_check
    _
  $region27: #{block_forward.1} parent=0 // pred_check_branch
    %471 = sbr.rel (0) target = $region29
  $region28: #{block_forward.1} parent=0 // pred_region
    _
  $region29: #{block_forward.1} parent=0 // pred_fallthru
    _

</llo_original>
